<compile_context>
chip_gen: v7x
topology: tpu7x:2x2x1
jax: 0.10.0
libtpu: 0.0.40
codegen_flags: <defaults>
</compile_context>

<pallas_src>
import functools

import jax
import jax.numpy as jnp
from jax.experimental import pallas as pl
from jax.experimental.pallas import tpu as pltpu

# CLIP preprocessing constants (per channel).
_CLIP_MEAN = (0.48145466, 0.4578275, 0.40821073)
_CLIP_STD = (0.26862954, 0.26130258, 0.27577711)

_TEXT_PAD = 128                       # lane-dense padded text axis
_B_TILE_MAX = 256                     # MXU rows on v6e/v7x
_TK_CANDIDATES = (8192, 4096, 2048, 1024, 512, 256, 128)
_TK_GRAIN = 2048                      # F padding grain for large (tiled) shapes
_VMEM_BUDGET = 40 * 1024 * 1024       # tile-selection budget (fits v7x 64 MiB)
_VMEM_LIMIT = 48 * 1024 * 1024        # explicit scoped-VMEM limit for Mosaic


# --------------------------------------------------------------------------- #
# Kernel
# --------------------------------------------------------------------------- #
def _finalize(img_acc_f32, bias_ref, txt_t_ref, probs_ref, dec_ref, num_text):
    """Folded bias -> L2 norm -> cosine logits -> masked softmax + argmax."""
    img = img_acc_f32 + bias_ref[...]                                  # (B, D)
    img = img * jax.lax.rsqrt(
        jnp.sum(img * img, axis=-1, keepdims=True) + 1e-12)

    # Cosine logits against the pre-scaled, pre-transposed text features.
    logits = jnp.dot(img, txt_t_ref[...],
                     preferred_element_type=jnp.float32)               # (B, TP)

    # Mask the padded text lanes, numerically-stable softmax.
    lane = jax.lax.broadcasted_iota(jnp.int32, logits.shape, 1)
    logits = jnp.where(lane < num_text, logits, -1e30)
    m = jnp.max(logits, axis=-1, keepdims=True)
    e = jnp.exp(logits - m)
    probs_ref[...] = e * pl.reciprocal(
        jnp.sum(e, axis=-1, keepdims=True), approx=True)

    # In-kernel argmax (first index attaining the row max), broadcast across
    # lanes so the output stays lane-dense.
    idx = jnp.where(logits >= m, lane.astype(jnp.float32),
                    jnp.float32(logits.shape[-1]))
    dec = jnp.min(idx, axis=-1, keepdims=True)
    dec_ref[...] = jnp.broadcast_to(dec, dec_ref.shape).astype(jnp.int32)


def clip_probs_kernel(x_ref, w_ref, bias_ref, txt_t_ref, probs_ref, dec_ref,
                      acc_ref=None, *, num_text):
    """Fused image projection -> L2 norm -> cosine logits -> softmax -> argmax.

    Two trace-time variants:
      acc_ref is None : single-shot (grid=(n_b,)), everything resident, no
                        accumulator, no pl.when init/finalize.
      acc_ref given   : K-tiled reduction (grid=(n_b, n_k)), f32 VMEM
                        accumulator with init at k==0 / finalize at last k.

    x_ref:     (BT, F|TK)  bf16 raw (un-normalized) crop pixels
    w_ref:     (F|TK, D)   bf16 folded projection weights (1/std baked in)
    bias_ref:  (1, D)      f32  folded bias  (-(mean/std) @ W)
    txt_t_ref: (D, TP)     f32  (logit_scale * L2-normed text).T, zero-padded
    probs_ref: (BT, TP)    f32  lane-dense softmax output
    dec_ref:   (BT, TP)    i32  per-row argmax broadcast across lanes
    acc_ref:   (BT, D)     f32  VMEM accumulator scratch (tiled path only)
    """
    if acc_ref is None:
        img = jnp.dot(x_ref[...], w_ref[...],
                      preferred_element_type=jnp.float32)
        _finalize(img, bias_ref, txt_t_ref, probs_ref, dec_ref, num_text)
        return

    k = pl.program_id(1)

    @pl.when(k == 0)
    def _():
        acc_ref[...] = jnp.zeros_like(acc_ref)

    acc_ref[...] += jnp.dot(x_ref[...], w_ref[...],
                            preferred_element_type=jnp.float32)

    @pl.when(k == pl.num_programs(1) - 1)
    def _():
        _finalize(acc_ref[...], bias_ref, txt_t_ref, probs_ref, dec_ref,
                  num_text)


# --------------------------------------------------------------------------- #
# pallas_call wrapper
# --------------------------------------------------------------------------- #
def _vmem_single(bt, f_pad, d, tp):
    # 2x double-buffering headroom on everything.
    return 2 * (bt * f_pad * 2 + f_pad * d * 2 + d * 4 + d * tp * 4
                + bt * tp * 8)


def _vmem_tiled(bt, tk, d, tp):
    return (2 * bt * tk * 2 + 2 * tk * d * 2        # double-buffered x / w tiles
            + 2 * (d * 4 + d * tp * 4)              # bias + txt (resident)
            + bt * d * 4                            # f32 accumulator
            + 2 * bt * tp * 8)                      # probs + decision slabs


def clip_get_probs(x_flat_bf16, w_bf16, bias, txt_t, *, num_text,
                   tk=None, b_tile=None):
    """Dispatch to the single-shot or K-tiled kernel based on a VMEM budget."""
    B, F_pad = x_flat_bf16.shape
    F_pad_w, D = w_bf16.shape
    assert F_pad == F_pad_w
    TP = txt_t.shape[1]

    if b_tile is None:
        b_tile = B if B <= _B_TILE_MAX else _B_TILE_MAX
    assert B % b_tile == 0
    n_b = B // b_tile

    # Choose path / K tile.
    if tk is None and _vmem_single(b_tile, F_pad, D, TP) <= _VMEM_BUDGET:
        tk_sel = None                                 # single-shot path
    else:
        tk_sel = tk
        if tk_sel is None:
            for cand in _TK_CANDIDATES:
                if (F_pad % cand == 0
                        and _vmem_tiled(b_tile, cand, D, TP) <= _VMEM_BUDGET):
                    tk_sel = cand
                    break
        assert tk_sel is not None and F_pad % tk_sel == 0

    kernel = functools.partial(clip_probs_kernel, num_text=num_text)
    out_shape = (jax.ShapeDtypeStruct((B, TP), jnp.float32),
                 jax.ShapeDtypeStruct((B, TP), jnp.int32))

    if tk_sel is None:
        grid_spec = pltpu.PrefetchScalarGridSpec(
            num_scalar_prefetch=0,
            grid=(n_b,),
            in_specs=[
                pl.BlockSpec((b_tile, F_pad), lambda b: (b, 0)),   # x resident
                pl.BlockSpec((F_pad, D), lambda b: (0, 0)),        # w resident
                pl.BlockSpec((1, D), lambda b: (0, 0)),            # bias
                pl.BlockSpec((D, TP), lambda b: (0, 0)),           # txt^T
            ],
            out_specs=[pl.BlockSpec((b_tile, TP), lambda b: (b, 0)),
                       pl.BlockSpec((b_tile, TP), lambda b: (b, 0))],
            scratch_shapes=[],
        )
        dims = ("parallel",)
    else:
        n_k = F_pad // tk_sel
        grid_spec = pltpu.PrefetchScalarGridSpec(
            num_scalar_prefetch=0,
            grid=(n_b, n_k),                       # reduction axis last
            in_specs=[
                pl.BlockSpec((b_tile, tk_sel), lambda b, k: (b, k)),
                pl.BlockSpec((tk_sel, D), lambda b, k: (k, 0)),
                pl.BlockSpec((1, D), lambda b, k: (0, 0)),
                pl.BlockSpec((D, TP), lambda b, k: (0, 0)),
            ],
            out_specs=[pl.BlockSpec((b_tile, TP), lambda b, k: (b, 0)),
                       pl.BlockSpec((b_tile, TP), lambda b, k: (b, 0))],
            scratch_shapes=[pltpu.VMEM((b_tile, D), jnp.float32)],
        )
        dims = ("parallel", "arbitrary")

    probs_padded, dec_slab = pl.pallas_call(
        kernel,
        out_shape=out_shape,
        grid_spec=grid_spec,
        compiler_params=pltpu.CompilerParams(
            dimension_semantics=dims,
            vmem_limit_bytes=_VMEM_LIMIT),
    )(x_flat_bf16, w_bf16, bias, txt_t)
    return probs_padded, dec_slab


# --------------------------------------------------------------------------- #
# One-time (offline) constant folding
# --------------------------------------------------------------------------- #
def build_constants(w_img_f32, txt_feat, logit_scale):
    """Fold CLIP mean/std into the projection; pre-scale/transpose text."""
    F, D = w_img_f32.shape
    mean = jnp.array(_CLIP_MEAN, jnp.float32)
    std = jnp.array(_CLIP_STD, jnp.float32)
    C = mean.shape[0]
    n_pix = F // C
    # NHWC flatten order -> per-channel constants tile along F.
    # TODO(synk): if crops ever arrive CHW, repeat constants in channel blocks
    #             instead of tiling (silent corruption otherwise).
    inv_std_flat = jnp.tile(1.0 / std, n_pix)                 # (F,)
    mean_over_std_flat = jnp.tile(mean / std, n_pix)          # (F,)

    # (x - mean)/std @ W  ==  x @ (inv_std * W)  -  (mean/std) @ W
    w_folded = w_img_f32 * inv_std_flat[:, None]              # (F, D)
    bias = -(mean_over_std_flat[None, :] @ w_img_f32)         # (1, D)

    # Text side: L2 normalize, bake in logit scale (kept in f32 — do NOT bake
    # the x100 scale into bf16), pad to 128 rows, transpose to (D, TP) offline.
    txt = txt_feat / jnp.linalg.norm(txt_feat, axis=-1, keepdims=True)
    txt_scaled = jnp.float32(logit_scale) * txt
    txt_padded = jnp.zeros((_TEXT_PAD, D), jnp.float32)
    txt_padded = txt_padded.at[: txt_feat.shape[0]].set(txt_scaled)
    txt_t = jnp.asarray(txt_padded.T)                         # (D, TP)

    # Zero-pad F (mathematically a no-op): 128-grain for small (single-shot)
    # shapes, 2048-grain for large shapes so big K tiles divide evenly.
    grain = _TK_GRAIN if F > _TK_GRAIN else 128
    F_pad = ((F + grain - 1) // grain) * grain
    w_folded = jnp.pad(w_folded, ((0, F_pad - F), (0, 0)))

    return (w_folded.astype(jnp.bfloat16),
            bias.astype(jnp.float32),
            txt_t)


# --------------------------------------------------------------------------- #
# Per-frame path
# --------------------------------------------------------------------------- #
def affect_recognition_forward(frame_crops, w_folded_bf16, bias, txt_t, *,
                               num_text, tk=None, b_tile=None):
    """frame_crops: (B, H, W, C) raw face crops in [0, 1].

    Returns (probs (B, num_text), decision (B,)):
    decision==0 -> "SMILE", decision==1 -> "FROWN"
    (mirrors the np.argmax(probs[0]) == 0 branch of the PyTorch module).
    """
    B = frame_crops.shape[0]
    x_flat = frame_crops.reshape(B, -1).astype(jnp.bfloat16)   # (B, F)
    F = x_flat.shape[1]
    F_pad = w_folded_bf16.shape[0]
    if F_pad > F:
        x_flat = jnp.pad(x_flat, ((0, 0), (0, F_pad - F)))

    probs_padded, dec_slab = clip_get_probs(
        x_flat, w_folded_bf16, bias, txt_t,
        num_text=num_text, tk=tk, b_tile=b_tile)
    return probs_padded[:, :num_text], dec_slab[:, 0]


def _reference_probs(frame_crops, w_img, txt_feat, logit_scale):
    """Plain-JAX f32 reference with the original un-folded math."""
    mean = jnp.array(_CLIP_MEAN, jnp.float32)
    std = jnp.array(_CLIP_STD, jnp.float32)
    B = frame_crops.shape[0]
    x_ref = ((frame_crops - mean) / std).reshape(B, -1)
    img_ref = x_ref @ w_img
    img_ref = img_ref / jnp.linalg.norm(img_ref, axis=-1, keepdims=True)
    txt_ref = txt_feat / jnp.linalg.norm(txt_feat, axis=-1, keepdims=True)
    return jax.nn.softmax(logit_scale * img_ref @ txt_ref.T, axis=-1)


if __name__ == "__main__":
    key = jax.random.PRNGKey(0)
    k_crop, k_w, k_txt = jax.random.split(key, 3)

    # ---------------- Test 1: demo shapes -> single-shot (no K grid) path ---
    B, H, W, C = 2, 16, 16, 3
    D, T = 128, 2
    F = H * W * C

    frame_crops = jax.random.uniform(k_crop, (B, H, W, C), jnp.float32)
    w_img = jax.random.normal(k_w, (F, D), jnp.float32) * (1.0 / jnp.sqrt(F))
    txt_feat = jax.random.normal(k_txt, (T, D), jnp.float32)
    logit_scale = 100.0  # exp(learned CLIP temperature) ~ 100

    w_folded, bias, txt_t = build_constants(w_img, txt_feat, logit_scale)

    fwd = jax.jit(functools.partial(affect_recognition_forward, num_text=T))
    probs, decision = fwd(frame_crops, w_folded, bias, txt_t)
    jax.block_until_ready((probs, decision))

    assert probs.shape == (B, T) and decision.shape == (B,)
    assert jnp.allclose(jnp.sum(probs, axis=-1), 1.0, atol=1e-2)
    ref_probs = _reference_probs(frame_crops, w_img, txt_feat, logit_scale)
    assert float(jnp.max(jnp.abs(probs - ref_probs))) < 5e-2  # bf16 tolerance
    assert bool(jnp.all(decision == jnp.argmax(probs, axis=-1)))

    # ---------------- Test 2: batched, K-tiled + parallel-B grid path -------
    B2 = 16
    k2 = jax.random.fold_in(key, 2)
    frame_crops2 = jax.random.uniform(k2, (B2, H, W, C), jnp.float32)
    logit_scale2 = 10.0
    w_folded2, bias2, txt_t2 = build_constants(w_img, txt_feat, logit_scale2)

    fwd2 = jax.jit(functools.partial(affect_recognition_forward, num_text=T,
                                     tk=256, b_tile=8))
    probs2, decision2 = fwd2(frame_crops2, w_folded2, bias2, txt_t2)
    jax.block_until_ready((probs2, decision2))

    assert probs2.shape == (B2, T) and decision2.shape == (B2,)
    assert jnp.allclose(jnp.sum(probs2, axis=-1), 1.0, atol=1e-2)
    ref_probs2 = _reference_probs(frame_crops2, w_img, txt_feat, logit_scale2)
    assert float(jnp.max(jnp.abs(probs2 - ref_probs2))) < 5e-2
    assert bool(jnp.all(decision2 == jnp.argmax(probs2, axis=-1)))

    print("KERNEL_OK")
</pallas_src>

<mosaic_0001>
module attributes {stable_mosaic.version = 11 : i64} {
  func.func @clip_probs_kernel(%arg0: i32, %arg1: memref<2x768xbf16, #tpu.memory_space<vmem>>, %arg2: memref<768x128xbf16, #tpu.memory_space<vmem>>, %arg3: memref<1x128xf32, #tpu.memory_space<vmem>>, %arg4: memref<128x128xf32, #tpu.memory_space<vmem>>, %arg5: memref<2x128xf32, #tpu.memory_space<vmem>>, %arg6: memref<2x128xi32, #tpu.memory_space<vmem>>) attributes {dimension_semantics = [#tpu.dimension_semantics<parallel>], iteration_bounds = array<i64: 1>, scalar_prefetch = 0 : i64, scratch_operands = 0 : i64, tpu.core_type = #tpu.core_type<tc>, window_params = [{transform_indices = @transform_0, window_bounds = array<i64: 2, 768>}, {pipeline_mode = #tpu.pipeline_mode<synchronous>, transform_indices = @transform_1, window_bounds = array<i64: 768, 128>}, {pipeline_mode = #tpu.pipeline_mode<synchronous>, transform_indices = @transform_2, window_bounds = array<i64: 1, 128>}, {pipeline_mode = #tpu.pipeline_mode<synchronous>, transform_indices = @transform_3, window_bounds = array<i64: 128, 128>}, {transform_indices = @transform_4, window_bounds = array<i64: 2, 128>}, {transform_indices = @transform_5, window_bounds = array<i64: 2, 128>}]} {
    %c0 = arith.constant 0 : index
    %c0_0 = arith.constant 0 : index
    %0 = vector.load %arg1[%c0, %c0_0] : memref<2x768xbf16, #tpu.memory_space<vmem>>, vector<2x768xbf16>
    %c0_1 = arith.constant 0 : index
    %c0_2 = arith.constant 0 : index
    %1 = vector.load %arg2[%c0_1, %c0_2] : memref<768x128xbf16, #tpu.memory_space<vmem>>, vector<768x128xbf16>
    %cst = arith.constant dense<0.000000e+00> : vector<2x128xf32>
    %2 = tpu.matmul %0, %1, %cst {dimension_numbers = #tpu.dot_dimension_numbers<[1], [0], [0], [1], [0, 0, 1, 1], [], []>} : vector<2x768xbf16>, vector<768x128xbf16>, vector<2x128xf32> -> vector<2x128xf32>
    %c0_3 = arith.constant 0 : index
    %c0_4 = arith.constant 0 : index
    %3 = vector.load %arg3[%c0_3, %c0_4] : memref<1x128xf32, #tpu.memory_space<vmem>>, vector<1x128xf32>
    %4 = vector.broadcast %3 : vector<1x128xf32> to vector<2x128xf32>
    %5 = arith.addf %2, %4 : vector<2x128xf32>
    %6 = arith.mulf %5, %5 : vector<2x128xf32>
    %cst_5 = arith.constant dense<0.000000e+00> : vector<2xf32>
    %7 = vector.multi_reduction <add>, %6, %cst_5 [1] : vector<2x128xf32> to vector<2xf32>
    %8 = vector.shape_cast %7 : vector<2xf32> to vector<2x1xf32>
    %cst_6 = arith.constant 9.99999996E-13 : f32
    %9 = vector.broadcast %cst_6 : f32 to vector<2x1xf32>
    %10 = arith.addf %8, %9 : vector<2x1xf32>
    %11 = math.rsqrt %10 : vector<2x1xf32>
    %12 = vector.broadcast %11 : vector<2x1xf32> to vector<2x128xf32>
    %13 = arith.mulf %5, %12 : vector<2x128xf32>
    %c0_7 = arith.constant 0 : index
    %c0_8 = arith.constant 0 : index
    %14 = vector.load %arg4[%c0_7, %c0_8] : memref<128x128xf32, #tpu.memory_space<vmem>>, vector<128x128xf32>
    %cst_9 = arith.constant dense<0.000000e+00> : vector<2x128xf32>
    %15 = tpu.matmul %13, %14, %cst_9 {dimension_numbers = #tpu.dot_dimension_numbers<[1], [0], [0], [1], [0, 0, 1, 1], [], []>} : vector<2x128xf32>, vector<128x128xf32>, vector<2x128xf32> -> vector<2x128xf32>
    %16 = tpu.iota {dimensions = array<i32: 1>} : vector<2x128xi32>
    %c2_i32 = arith.constant 2 : i32
    %17 = vector.broadcast %c2_i32 : i32 to vector<2x128xi32>
    %18 = arith.cmpi slt, %16, %17 : vector<2x128xi32>
    %cst_10 = arith.constant -1.000000e+30 : f32
    %19 = vector.broadcast %cst_10 : f32 to vector<2x128xf32>
    %20 = arith.select %18, %15, %19 : vector<2x128xi1>, vector<2x128xf32>
    %cst_11 = arith.constant dense<0xFF800000> : vector<2xf32>
    %21 = vector.multi_reduction <maximumf>, %20, %cst_11 [1] : vector<2x128xf32> to vector<2xf32>
    %22 = vector.shape_cast %21 : vector<2xf32> to vector<2x1xf32>
    %23 = vector.broadcast %22 : vector<2x1xf32> to vector<2x128xf32>
    %24 = arith.subf %20, %23 : vector<2x128xf32>
    %25 = math.exp %24 : vector<2x128xf32>
    %cst_12 = arith.constant dense<0.000000e+00> : vector<2xf32>
    %26 = vector.multi_reduction <add>, %25, %cst_12 [1] : vector<2x128xf32> to vector<2xf32>
    %27 = vector.shape_cast %26 : vector<2xf32> to vector<2x1xf32>
    %28 = tpu.reciprocal %27 {approx = true} : vector<2x1xf32> -> vector<2x1xf32>
    %29 = vector.broadcast %28 : vector<2x1xf32> to vector<2x128xf32>
    %30 = arith.mulf %25, %29 : vector<2x128xf32>
    %c0_13 = arith.constant 0 : index
    %c0_14 = arith.constant 0 : index
    %31 = vector.load %arg5[%c0_13, %c0_14] : memref<2x128xf32, #tpu.memory_space<vmem>>, vector<2x128xf32>
    tpu.vector_store %arg5[%c0_13, %c0_14], %30 {strides = array<i32>} : memref<2x128xf32, #tpu.memory_space<vmem>>, vector<2x128xf32>,
    %32 = vector.broadcast %22 : vector<2x1xf32> to vector<2x128xf32>
    %33 = arith.cmpf oge, %20, %32 : vector<2x128xf32>
    %34 = arith.sitofp %16 : vector<2x128xi32> to vector<2x128xf32>
    %cst_15 = arith.constant 1.280000e+02 : f32
    %35 = vector.broadcast %cst_15 : f32 to vector<2x128xf32>
    %36 = arith.select %33, %34, %35 : vector<2x128xi1>, vector<2x128xf32>
    %cst_16 = arith.constant dense<0x7F800000> : vector<2xf32>
    %37 = vector.multi_reduction <minimumf>, %36, %cst_16 [1] : vector<2x128xf32> to vector<2xf32>
    %38 = vector.shape_cast %37 : vector<2xf32> to vector<2x1xf32>
    %39 = vector.shape_cast %38 : vector<2x1xf32> to vector<2x1xf32>
    %40 = vector.broadcast %39 : vector<2x1xf32> to vector<2x128xf32>
    %41 = arith.fptosi %40 : vector<2x128xf32> to vector<2x128xi32>
    %c0_17 = arith.constant 0 : index
    %c0_18 = arith.constant 0 : index
    %42 = vector.load %arg6[%c0_17, %c0_18] : memref<2x128xi32, #tpu.memory_space<vmem>>, vector<2x128xi32>
    tpu.vector_store %arg6[%c0_17, %c0_18], %41 {strides = array<i32>} : memref<2x128xi32, #tpu.memory_space<vmem>>, vector<2x128xi32>,
    return
  }
  func.func @transform_0(%arg0: i32) -> (i32, i32) {
    %c0_i32 = arith.constant 0 : i32
    %c0_i32_0 = arith.constant 0 : i32
    return %arg0, %c0_i32 : i32, i32
  }
  func.func @transform_1(%arg0: i32) -> (i32, i32) {
    %c0_i32 = arith.constant 0 : i32
    %c0_i32_0 = arith.constant 0 : i32
    %c0_i32_1 = arith.constant 0 : i32
    return %c0_i32, %c0_i32_0 : i32, i32
  }
  func.func @transform_2(%arg0: i32) -> (i32, i32) {
    %c0_i32 = arith.constant 0 : i32
    %c0_i32_0 = arith.constant 0 : i32
    %c0_i32_1 = arith.constant 0 : i32
    return %c0_i32, %c0_i32_0 : i32, i32
  }
  func.func @transform_3(%arg0: i32) -> (i32, i32) {
    %c0_i32 = arith.constant 0 : i32
    %c0_i32_0 = arith.constant 0 : i32
    %c0_i32_1 = arith.constant 0 : i32
    return %c0_i32, %c0_i32_0 : i32, i32
  }
  func.func @transform_4(%arg0: i32) -> (i32, i32) {
    %c0_i32 = arith.constant 0 : i32
    %c0_i32_0 = arith.constant 0 : i32
    return %arg0, %c0_i32 : i32, i32
  }
  func.func @transform_5(%arg0: i32) -> (i32, i32) {
    %c0_i32 = arith.constant 0 : i32
    %c0_i32_0 = arith.constant 0 : i32
    return %arg0, %c0_i32 : i32, i32
  }
}

</mosaic_0001>

<llo_original>
// kernel: affect_recognition_forward.1
$region0: #{affect_recognition_forward.1}
  #allocation0 [shape = 'u32[]', space=smem, size = 0x4, offset = 0x4, fixed_abs, tag = 'smem constant byte address 0x4 - core index']
  #allocation1 [shape = 'u32[144,128]{1,0:T(1,128)}', space=vmem, size = 0x12000, scoped, tag = 'internal scratch']
  %s0 = inlined_call_operand.vmem [shape: bf16[2,768], index: 0, kind: input, shape index: {}]
  %s1 = inlined_call_operand.vmem [shape: bf16[768,128], index: 1, kind: input, shape index: {}]
  %s2 = inlined_call_operand.vmem [shape: f32[1,128], index: 2, kind: input, shape index: {}]
  %s3 = inlined_call_operand.vmem [shape: f32[128,128], index: 3, kind: input, shape index: {}]
  %s4 = inlined_call_operand.hbm [shape: f32[2,128], index: 4, kind: output, shape index: {0}]
  %s5 = inlined_call_operand.vmem [shape: s32[2,128], index: 5, kind: output, shape index: {1}]
  %6 = xla_tuple %s4, %s5
  %s7 = sld [smem:[#allocation0]]
  $region34: #{affect_recognition_forward.1} parent=0
    _
  %s9 = ssub.s32 1, %s7
  %s10 = scalar_select 0, %s9, %s7
  $region1: #{affect_recognition_forward.1} parent=0
    #allocation2 [shape = 'u8[1024]{0}', space=vmem, size = 0x400, scoped, tag = 'output window, operand 0, single buffered']
    #allocation3 [shape = 's32[1]{0}', space=sflag, size = 0x4, scoped, tag = 'scoped memory for affect_recognition_forward.1']
    %11 = vsyncpa [#allocation3], 0
    // Predicated region
    $region2: #{affect_recognition_forward.1} parent=1 // pred_check
      _
    $region3: #{affect_recognition_forward.1} parent=1 // pred_check_branch
      %13 = sbr.rel (0) target = $region5
    $region4: #{affect_recognition_forward.1} parent=1 // pred_region
      _
    $region5: #{affect_recognition_forward.1} parent=1 // pred_fallthru
      _
    // Predicated region
    $region6: #{affect_recognition_forward.1} parent=1 // pred_check
      _
    $region7: #{affect_recognition_forward.1} parent=1 // pred_check_branch
      %15 = sbr.rel (0) target = $region9
    $region8: #{affect_recognition_forward.1} parent=1 // pred_region
      _
    $region9: #{affect_recognition_forward.1} parent=1 // pred_fallthru
      _
    // Predicated region
    $region10: #{affect_recognition_forward.1} parent=1 // pred_check
      _
    $region11: #{affect_recognition_forward.1} parent=1 // pred_check_branch
      %17 = sbr.rel (0) target = $region13
    $region12: #{affect_recognition_forward.1} parent=1 // pred_region
      _
    $region13: #{affect_recognition_forward.1} parent=1 // pred_fallthru
      _
    // Predicated region
    $region14: #{affect_recognition_forward.1} parent=1 // pred_check
      _
    $region15: #{affect_recognition_forward.1} parent=1 // pred_check_branch
      %19 = sbr.rel (0) target = $region17
    $region16: #{affect_recognition_forward.1} parent=1 // pred_region
      _
    $region17: #{affect_recognition_forward.1} parent=1 // pred_fallthru
      _
    %v21 = vld [vmem:[%s0] sm:$0x3f]
    %v22 = vld [vmem:[%s1] sm:$0xf]
    %v23 = vld [vmem:[%s1 + $0x4] sm:$0xf]
    %v24 = vld [vmem:[%s1 + $0x8] sm:$0xf]
    %v25 = vld [vmem:[%s1 + $0xc] sm:$0xf]
    %v26 = vld [vmem:[%s1 + $0x10] sm:$0xf]
    %v27 = vld [vmem:[%s1 + $0x14] sm:$0xf]
    %v28 = vld [vmem:[%s1 + $0x18] sm:$0xf]
    %v29 = vld [vmem:[%s1 + $0x1c] sm:$0xf]
    %v30 = vld [vmem:[%s1 + $0x20] sm:$0xf]
    %v31 = vld [vmem:[%s1 + $0x24] sm:$0xf]
    %v32 = vld [vmem:[%s1 + $0x28] sm:$0xf]
    %v33 = vld [vmem:[%s1 + $0x2c] sm:$0xf]
    %v34 = vld [vmem:[%s1 + $0x30] sm:$0xf]
    %v35 = vld [vmem:[%s1 + $0x34] sm:$0xf]
    %v36 = vld [vmem:[%s1 + $0x38] sm:$0xf]
    %v37 = vld [vmem:[%s1 + $0x3c] sm:$0xf]
    %v38 = vld [vmem:[%s1 + $0x40] sm:$0xf]
    %v39 = vld [vmem:[%s1 + $0x44] sm:$0xf]
    %v40 = vld [vmem:[%s1 + $0x48] sm:$0xf]
    %v41 = vld [vmem:[%s1 + $0x4c] sm:$0xf]
    %v42 = vld [vmem:[%s1 + $0x50] sm:$0xf]
    %v43 = vld [vmem:[%s1 + $0x54] sm:$0xf]
    %v44 = vld [vmem:[%s1 + $0x58] sm:$0xf]
    %v45 = vld [vmem:[%s1 + $0x5c] sm:$0xf]
    %v46 = vld [vmem:[%s1 + $0x60] sm:$0xf]
    %v47 = vld [vmem:[%s1 + $0x64] sm:$0xf]
    %v48 = vld [vmem:[%s1 + $0x68] sm:$0xf]
    %v49 = vld [vmem:[%s1 + $0x6c] sm:$0xf]
    %v50 = vld [vmem:[%s1 + $0x70] sm:$0xf]
    %v51 = vld [vmem:[%s1 + $0x74] sm:$0xf]
    %v52 = vld [vmem:[%s1 + $0x78] sm:$0xf]
    %v53 = vld [vmem:[%s1 + $0x7c] sm:$0xf]
    %v54 = vld [vmem:[%s1 + $0x80] sm:$0xf]
    %v55 = vld [vmem:[%s1 + $0x84] sm:$0xf]
    %v56 = vld [vmem:[%s1 + $0x88] sm:$0xf]
    %v57 = vld [vmem:[%s1 + $0x8c] sm:$0xf]
    %v58 = vld [vmem:[%s1 + $0x90] sm:$0xf]
    %v59 = vld [vmem:[%s1 + $0x94] sm:$0xf]
    %v60 = vld [vmem:[%s1 + $0x98] sm:$0xf]
    %v61 = vld [vmem:[%s1 + $0x9c] sm:$0xf]
    %v62 = vld [vmem:[%s1 + $0xa0] sm:$0xf]
    %v63 = vld [vmem:[%s1 + $0xa4] sm:$0xf]
    %v64 = vld [vmem:[%s1 + $0xa8] sm:$0xf]
    %v65 = vld [vmem:[%s1 + $0xac] sm:$0xf]
    %v66 = vld [vmem:[%s1 + $0xb0] sm:$0xf]
    %v67 = vld [vmem:[%s1 + $0xb4] sm:$0xf]
    %v68 = vld [vmem:[%s1 + $0xb8] sm:$0xf]
    %v69 = vld [vmem:[%s1 + $0xbc] sm:$0xf]
    %v70 = vld [vmem:[%s1 + $0xc0] sm:$0xf]
    %v71 = vld [vmem:[%s1 + $0xc4] sm:$0xf]
    %v72 = vld [vmem:[%s1 + $0xc8] sm:$0xf]
    %v73 = vld [vmem:[%s1 + $0xcc] sm:$0xf]
    %v74 = vld [vmem:[%s1 + $0xd0] sm:$0xf]
    %v75 = vld [vmem:[%s1 + $0xd4] sm:$0xf]
    %v76 = vld [vmem:[%s1 + $0xd8] sm:$0xf]
    %v77 = vld [vmem:[%s1 + $0xdc] sm:$0xf]
    %v78 = vld [vmem:[%s1 + $0xe0] sm:$0xf]
    %v79 = vld [vmem:[%s1 + $0xe4] sm:$0xf]
    %v80 = vld [vmem:[%s1 + $0xe8] sm:$0xf]
    %v81 = vld [vmem:[%s1 + $0xec] sm:$0xf]
    %v82 = vld [vmem:[%s1 + $0xf0] sm:$0xf]
    %v83 = vld [vmem:[%s1 + $0xf4] sm:$0xf]
    %v84 = vld [vmem:[%s1 + $0xf8] sm:$0xf]
    %v85 = vld [vmem:[%s1 + $0xfc] sm:$0xf]
    %v86 = vld [vmem:[%s1 + $0x100] sm:$0xf]
    %v87 = vld [vmem:[%s1 + $0x104] sm:$0xf]
    %v88 = vld [vmem:[%s1 + $0x108] sm:$0xf]
    %v89 = vld [vmem:[%s1 + $0x10c] sm:$0xf]
    %v90 = vld [vmem:[%s1 + $0x110] sm:$0xf]
    %v91 = vld [vmem:[%s1 + $0x114] sm:$0xf]
    %v92 = vld [vmem:[%s1 + $0x118] sm:$0xf]
    %v93 = vld [vmem:[%s1 + $0x11c] sm:$0xf]
    %v94 = vld [vmem:[%s1 + $0x120] sm:$0xf]
    %v95 = vld [vmem:[%s1 + $0x124] sm:$0xf]
    %v96 = vld [vmem:[%s1 + $0x128] sm:$0xf]
    %v97 = vld [vmem:[%s1 + $0x12c] sm:$0xf]
    %v98 = vld [vmem:[%s1 + $0x130] sm:$0xf]
    %v99 = vld [vmem:[%s1 + $0x134] sm:$0xf]
    %v100 = vld [vmem:[%s1 + $0x138] sm:$0xf]
    %v101 = vld [vmem:[%s1 + $0x13c] sm:$0xf]
    %v102 = vld [vmem:[%s1 + $0x140] sm:$0xf]
    %v103 = vld [vmem:[%s1 + $0x144] sm:$0xf]
    %v104 = vld [vmem:[%s1 + $0x148] sm:$0xf]
    %v105 = vld [vmem:[%s1 + $0x14c] sm:$0xf]
    %v106 = vld [vmem:[%s1 + $0x150] sm:$0xf]
    %v107 = vld [vmem:[%s1 + $0x154] sm:$0xf]
    %v108 = vld [vmem:[%s1 + $0x158] sm:$0xf]
    %v109 = vld [vmem:[%s1 + $0x15c] sm:$0xf]
    %v110 = vld [vmem:[%s1 + $0x160] sm:$0xf]
    %v111 = vld [vmem:[%s1 + $0x164] sm:$0xf]
    %v112 = vld [vmem:[%s1 + $0x168] sm:$0xf]
    %v113 = vld [vmem:[%s1 + $0x16c] sm:$0xf]
    %v114 = vld [vmem:[%s1 + $0x170] sm:$0xf]
    %v115 = vld [vmem:[%s1 + $0x174] sm:$0xf]
    %v116 = vld [vmem:[%s1 + $0x178] sm:$0xf]
    %v117 = vld [vmem:[%s1 + $0x17c] sm:$0xf]
    %v118 = vld [vmem:[%s2] sm:$0x1]
    %v120 = vlaneseq
    %v121 = vshrl.u32 %v120, 7
    %v122 = vsub.s32 0, %v121
    %v123 = vrot.slane %v118, %v122
    %v126 = vcombine.high %v21, %v21
    %v128 = vunpack.c.l.s4 1966171168
    %v129 = vunpack.c.0.s8 %v128
    %v130 = vlaneseq
    %v131 = vshrl.u32 %v130, 7
    %v132 = vsub.s32 %v129, %v131
    %v133 = vrot.slane %v21, %v132
    %v135 = vunpack.c.l.s4 1966171168
    %v136 = vunpack.c.0.s8 %v135
    %v137 = vlaneseq
    %v138 = vshrl.u32 %v137, 7
    %v139 = vsub.s32 %v136, %v138
    %v140 = vrot.slane %v126, %v139
    %v141 = vcombine.high %v133, %v133
    %v142 = vcombine.high %v140, %v140
    %v144 = vunpack.c.l.s4 1966171168
    %v145 = vunpack.c.0.s8 %v144
    %v146 = vlaneseq
    %v147 = vshrl.u32 %v146, 7
    %v148 = vsub.s32 %v145, %v147
    %v149 = vrot.slane %v133, %v148
    %v151 = vunpack.c.l.s4 1966171168
    %v152 = vunpack.c.0.s8 %v151
    %v153 = vlaneseq
    %v154 = vshrl.u32 %v153, 7
    %v155 = vsub.s32 %v152, %v154
    %v156 = vrot.slane %v140, %v155
    %v158 = vunpack.c.l.s4 1966171168
    %v159 = vunpack.c.0.s8 %v158
    %v160 = vlaneseq
    %v161 = vshrl.u32 %v160, 7
    %v162 = vsub.s32 %v159, %v161
    %v163 = vrot.slane %v141, %v162
    %v165 = vunpack.c.l.s4 1966171168
    %v166 = vunpack.c.0.s8 %v165
    %v167 = vlaneseq
    %v168 = vshrl.u32 %v167, 7
    %v169 = vsub.s32 %v166, %v168
    %v170 = vrot.slane %v142, %v169
    %v171 = vcombine.high %v149, %v149
    %v172 = vcombine.high %v163, %v163
    %v275 = vunpack.c.l.b16 %v22
    %v276 = vunpack.c.l.b16 %v23
    %v277 = vunpack.c.l.b16 %v24
    %v278 = vunpack.c.l.b16 %v25
    %v279 = vunpack.c.l.b16 %v26
    %v280 = vunpack.c.l.b16 %v27
    %v281 = vunpack.c.l.b16 %v28
    %v282 = vunpack.c.l.b16 %v29
    %v283 = vunpack.c.l.b16 %v30
    %v284 = vunpack.c.l.b16 %v31
    %v285 = vunpack.c.l.b16 %v32
    %v286 = vunpack.c.l.b16 %v33
    %v287 = vunpack.c.l.b16 %v34
    %v288 = vunpack.c.l.b16 %v35
    %v289 = vunpack.c.l.b16 %v36
    %v290 = vunpack.c.l.b16 %v37
    %v291 = vunpack.c.l.b16 %v38
    %v292 = vunpack.c.l.b16 %v39
    %v293 = vunpack.c.l.b16 %v40
    %v294 = vunpack.c.l.b16 %v41
    %v295 = vunpack.c.l.b16 %v42
    %v296 = vunpack.c.l.b16 %v43
    %v297 = vunpack.c.l.b16 %v44
    %v298 = vunpack.c.l.b16 %v45
    %v299 = vunpack.c.l.b16 %v46
    %v300 = vunpack.c.l.b16 %v47
    %v301 = vunpack.c.l.b16 %v48
    %v302 = vunpack.c.l.b16 %v49
    %v303 = vunpack.c.l.b16 %v50
    %v304 = vunpack.c.l.b16 %v51
    %v305 = vunpack.c.l.b16 %v52
    %v306 = vunpack.c.l.b16 %v53
    %v307 = vunpack.c.l.b16 %v54
    %v308 = vunpack.c.l.b16 %v55
    %v309 = vunpack.c.l.b16 %v56
    %v310 = vunpack.c.l.b16 %v57
    %v311 = vunpack.c.l.b16 %v58
    %v312 = vunpack.c.l.b16 %v59
    %v313 = vunpack.c.l.b16 %v60
    %v314 = vunpack.c.l.b16 %v61
    %v315 = vunpack.c.l.b16 %v62
    %v316 = vunpack.c.l.b16 %v63
    %v317 = vunpack.c.l.b16 %v64
    %v318 = vunpack.c.l.b16 %v65
    %v319 = vunpack.c.l.b16 %v66
    %v320 = vunpack.c.l.b16 %v67
    %v321 = vunpack.c.l.b16 %v68
    %v322 = vunpack.c.l.b16 %v69
    %v323 = vunpack.c.l.b16 %v70
    %v324 = vunpack.c.l.b16 %v71
    %v325 = vunpack.c.l.b16 %v72
    %v326 = vunpack.c.l.b16 %v73
    %v327 = vunpack.c.l.b16 %v74
    %v328 = vunpack.c.l.b16 %v75
    %v329 = vunpack.c.l.b16 %v76
    %v330 = vunpack.c.l.b16 %v77
    %v331 = vunpack.c.l.b16 %v78
    %v332 = vunpack.c.l.b16 %v79
    %v333 = vunpack.c.l.b16 %v80
    %v334 = vunpack.c.l.b16 %v81
    %v335 = vunpack.c.l.b16 %v82
    %v336 = vunpack.c.l.b16 %v83
    %v337 = vunpack.c.l.b16 %v84
    %v338 = vunpack.c.l.b16 %v85
    %v339 = vunpack.c.l.b16 %v86
    %v340 = vunpack.c.l.b16 %v87
    %v341 = vunpack.c.l.b16 %v88
    %v342 = vunpack.c.l.b16 %v89
    %v343 = vunpack.c.l.b16 %v90
    %v344 = vunpack.c.l.b16 %v91
    %v345 = vunpack.c.l.b16 %v92
    %v346 = vunpack.c.l.b16 %v93
    %v347 = vunpack.c.l.b16 %v94
    %v348 = vunpack.c.l.b16 %v95
    %v349 = vunpack.c.l.b16 %v96
    %v350 = vunpack.c.l.b16 %v97
    %v351 = vunpack.c.l.b16 %v98
    %v352 = vunpack.c.l.b16 %v99
    %v353 = vunpack.c.l.b16 %v100
    %v354 = vunpack.c.l.b16 %v101
    %v355 = vunpack.c.l.b16 %v102
    %v356 = vunpack.c.l.b16 %v103
    %v357 = vunpack.c.l.b16 %v104
    %v358 = vunpack.c.l.b16 %v105
    %v359 = vunpack.c.l.b16 %v106
    %v360 = vunpack.c.l.b16 %v107
    %v361 = vunpack.c.l.b16 %v108
    %v362 = vunpack.c.l.b16 %v109
    %v363 = vunpack.c.l.b16 %v110
    %v364 = vunpack.c.l.b16 %v111
    %v365 = vunpack.c.l.b16 %v112
    %v366 = vunpack.c.l.b16 %v113
    %v367 = vunpack.c.l.b16 %v114
    %v368 = vunpack.c.l.b16 %v115
    %v369 = vunpack.c.l.b16 %v116
    %v370 = vunpack.c.l.b16 %v117
    %v371 = vpack.c.b16 %v276, %v275
    %v372 = vpack.c.b16 %v278, %v277
    %v373 = vpack.c.b16 %v280, %v279
    %v374 = vpack.c.b16 %v282, %v281
    %v375 = vpack.c.b16 %v284, %v283
    %v376 = vpack.c.b16 %v286, %v285
    %v377 = vpack.c.b16 %v288, %v287
    %v378 = vpack.c.b16 %v290, %v289
    %v379 = vpack.c.b16 %v292, %v291
    %v380 = vpack.c.b16 %v294, %v293
    %v381 = vpack.c.b16 %v296, %v295
    %v382 = vpack.c.b16 %v298, %v297
    %v383 = vpack.c.b16 %v300, %v299
    %v384 = vpack.c.b16 %v302, %v301
    %v385 = vpack.c.b16 %v304, %v303
    %v386 = vpack.c.b16 %v306, %v305
    %v387 = vpack.c.b16 %v308, %v307
    %v388 = vpack.c.b16 %v310, %v309
    %v389 = vpack.c.b16 %v312, %v311
    %v390 = vpack.c.b16 %v314, %v313
    %v391 = vpack.c.b16 %v316, %v315
    %v392 = vpack.c.b16 %v318, %v317
    %v393 = vpack.c.b16 %v320, %v319
    %v394 = vpack.c.b16 %v322, %v321
    %v395 = vpack.c.b16 %v324, %v323
    %v396 = vpack.c.b16 %v326, %v325
    %v397 = vpack.c.b16 %v328, %v327
    %v398 = vpack.c.b16 %v330, %v329
    %v399 = vpack.c.b16 %v332, %v331
    %v400 = vpack.c.b16 %v334, %v333
    %v401 = vpack.c.b16 %v336, %v335
    %v402 = vpack.c.b16 %v338, %v337
    %v403 = vpack.c.b16 %v340, %v339
    %v404 = vpack.c.b16 %v342, %v341
    %v405 = vpack.c.b16 %v344, %v343
    %v406 = vpack.c.b16 %v346, %v345
    %v407 = vpack.c.b16 %v348, %v347
    %v408 = vpack.c.b16 %v350, %v349
    %v409 = vpack.c.b16 %v352, %v351
    %v410 = vpack.c.b16 %v354, %v353
    %v411 = vpack.c.b16 %v356, %v355
    %v412 = vpack.c.b16 %v358, %v357
    %v413 = vpack.c.b16 %v360, %v359
    %v414 = vpack.c.b16 %v362, %v361
    %v415 = vpack.c.b16 %v364, %v363
    %v416 = vpack.c.b16 %v366, %v365
    %v417 = vpack.c.b16 %v368, %v367
    %v418 = vpack.c.b16 %v370, %v369
    %467 = vmatprep.subr.bf16.mxu0 0
    %468 = vmatpush1.bf16.msra.mxu0 %v371
    %469 = vmatprep.subr.bf16.mxu0 0
    %470 = vmatpush1.bf16.msra.mxu0 %v372
    %471 = vmatprep.subr.bf16.mxu0 0
    %472 = vmatpush1.bf16.msra.mxu0 %v373
    %473 = vmatprep.subr.bf16.mxu0 0
    %474 = vmatpush1.bf16.msra.mxu0 %v374
    %475 = vmatprep.subr.bf16.mxu0 0
    %476 = vmatpush1.bf16.msra.mxu0 %v375
    %477 = vmatprep.subr.bf16.mxu0 0
    %478 = vmatpush1.bf16.msra.mxu0 %v376
    %479 = vmatprep.subr.bf16.mxu0 0
    %480 = vmatpush1.bf16.msra.mxu0 %v377
    %481 = vmatprep.subr.bf16.mxu0 0
    %482 = vmatpush1.bf16.msra.mxu0 %v378
    %483 = vmatprep.subr.bf16.mxu0 0
    %484 = vmatpush1.bf16.msra.mxu0 %v379
    %485 = vmatprep.subr.bf16.mxu0 0
    %486 = vmatpush1.bf16.msra.mxu0 %v380
    %487 = vmatprep.subr.bf16.mxu0 0
    %488 = vmatpush1.bf16.msra.mxu0 %v381
    %489 = vmatprep.subr.bf16.mxu0 0
    %490 = vmatpush1.bf16.msra.mxu0 %v382
    %491 = vmatprep.subr.bf16.mxu0 0
    %492 = vmatpush1.bf16.msra.mxu0 %v383
    %493 = vmatprep.subr.bf16.mxu0 0
    %494 = vmatpush1.bf16.msra.mxu0 %v384
    %495 = vmatprep.subr.bf16.mxu0 0
    %496 = vmatpush1.bf16.msra.mxu0 %v385
    %497 = vmatprep.subr.bf16.mxu0 0
    %498 = vmatpush1.bf16.msra.mxu0 %v386
    %499 = vmatprep.mubr.bf16.mxu0 %v163
    %500 = vmatmul.mubr.bf16.gmra.mrb[0].mxu0 %v149
    %v501 = vpop.f32.mrb[0].mxu0
    %v502 = vadd.f32 %v123, %v501
    %v503 = vpop.f32.mrb[0].mxu0
    %v504 = vpop.f32.mrb[0].mxu0
    %v505 = vpop.f32.mrb[0].mxu0
    %506 = vdwg.mxu0
    %507 = vmatprep.subr.bf16.mxu0 0
    %508 = vmatpush1.bf16.msra.mxu0 %v387
    %509 = vmatprep.subr.bf16.mxu0 0
    %510 = vmatpush1.bf16.msra.mxu0 %v388
    %511 = vmatprep.subr.bf16.mxu0 0
    %512 = vmatpush1.bf16.msra.mxu0 %v389
    %513 = vmatprep.subr.bf16.mxu0 0
    %514 = vmatpush1.bf16.msra.mxu0 %v390
    %515 = vmatprep.subr.bf16.mxu0 0
    %516 = vmatpush1.bf16.msra.mxu0 %v391
    %517 = vmatprep.subr.bf16.mxu0 0
    %518 = vmatpush1.bf16.msra.mxu0 %v392
    %519 = vmatprep.subr.bf16.mxu0 0
    %520 = vmatpush1.bf16.msra.mxu0 %v393
    %521 = vmatprep.subr.bf16.mxu0 0
    %522 = vmatpush1.bf16.msra.mxu0 %v394
    %523 = vmatprep.subr.bf16.mxu0 0
    %524 = vmatpush1.bf16.msra.mxu0 %v395
    %525 = vmatprep.subr.bf16.mxu0 0
    %526 = vmatpush1.bf16.msra.mxu0 %v396
    %527 = vmatprep.subr.bf16.mxu0 0
    %528 = vmatpush1.bf16.msra.mxu0 %v397
    %529 = vmatprep.subr.bf16.mxu0 0
    %530 = vmatpush1.bf16.msra.mxu0 %v398
    %531 = vmatprep.subr.bf16.mxu0 0
    %532 = vmatpush1.bf16.msra.mxu0 %v399
    %533 = vmatprep.subr.bf16.mxu0 0
    %534 = vmatpush1.bf16.msra.mxu0 %v400
    %535 = vmatprep.subr.bf16.mxu0 0
    %536 = vmatpush1.bf16.msra.mxu0 %v401
    %537 = vmatprep.subr.bf16.mxu0 0
    %538 = vmatpush1.bf16.msra.mxu0 %v402
    %539 = vmatprep.mubr.bf16.mxu0 %v172
    %540 = vmatmul.mubr.bf16.gmra.mrb[0].mxu0 %v171
    %v541 = vpop.f32.mrb[0].mxu0
    %v542 = vadd.f32 %v502, %v541
    %v543 = vpop.f32.mrb[0].mxu0
    %v544 = vpop.f32.mrb[0].mxu0
    %v545 = vpop.f32.mrb[0].mxu0
    %546 = vdwg.mxu0
    %547 = vmatprep.subr.bf16.mxu0 0
    %548 = vmatpush1.bf16.msra.mxu0 %v403
    %549 = vmatprep.subr.bf16.mxu0 0
    %550 = vmatpush1.bf16.msra.mxu0 %v404
    %551 = vmatprep.subr.bf16.mxu0 0
    %552 = vmatpush1.bf16.msra.mxu0 %v405
    %553 = vmatprep.subr.bf16.mxu0 0
    %554 = vmatpush1.bf16.msra.mxu0 %v406
    %555 = vmatprep.subr.bf16.mxu0 0
    %556 = vmatpush1.bf16.msra.mxu0 %v407
    %557 = vmatprep.subr.bf16.mxu0 0
    %558 = vmatpush1.bf16.msra.mxu0 %v408
    %559 = vmatprep.subr.bf16.mxu0 0
    %560 = vmatpush1.bf16.msra.mxu0 %v409
    %561 = vmatprep.subr.bf16.mxu0 0
    %562 = vmatpush1.bf16.msra.mxu0 %v410
    %563 = vmatprep.subr.bf16.mxu0 0
    %564 = vmatpush1.bf16.msra.mxu0 %v411
    %565 = vmatprep.subr.bf16.mxu0 0
    %566 = vmatpush1.bf16.msra.mxu0 %v412
    %567 = vmatprep.subr.bf16.mxu0 0
    %568 = vmatpush1.bf16.msra.mxu0 %v413
    %569 = vmatprep.subr.bf16.mxu0 0
    %570 = vmatpush1.bf16.msra.mxu0 %v414
    %571 = vmatprep.subr.bf16.mxu0 0
    %572 = vmatpush1.bf16.msra.mxu0 %v415
    %573 = vmatprep.subr.bf16.mxu0 0
    %574 = vmatpush1.bf16.msra.mxu0 %v416
    %575 = vmatprep.subr.bf16.mxu0 0
    %576 = vmatpush1.bf16.msra.mxu0 %v417
    %577 = vmatprep.subr.bf16.mxu0 0
    %578 = vmatpush1.bf16.msra.mxu0 %v418
    %579 = vmatprep.mubr.bf16.mxu0 %v170
    %580 = vmatmul.mubr.bf16.gmra.mrb[0].mxu0 %v156
    %v581 = vpop.f32.mrb[0].mxu0
    %v582 = vadd.f32 %v542, %v581
    %v583 = vpop.f32.mrb[0].mxu0
    %v584 = vpop.f32.mrb[0].mxu0
    %v585 = vpop.f32.mrb[0].mxu0
    %586 = vdwg.mxu0
    %v587 = vmul.f32 %v582, %v582
    %vm588 = vcmask 1041408
    %v589 = vsel %vm588, %v587, 0.0
    %590 = vadd.xlane.f32.xlu0 %v589
    %v591 = vpop.xlane.xlu0 %590
    %v592 = vadd.f32 %v591, 1e-12
    %v593 = vrsqrt.pop %v592
    %v594 = vmul.f32 %v582, %v593
    %v595 = vld [vmem:[%s3] sm:$0xff]
    %v596 = vld [vmem:[%s3 + $0x8] sm:$0xff]
    %v597 = vld [vmem:[%s3 + $0x10] sm:$0xff]
    %v598 = vld [vmem:[%s3 + $0x18] sm:$0xff]
    %v599 = vld [vmem:[%s3 + $0x20] sm:$0xff]
    %v600 = vld [vmem:[%s3 + $0x28] sm:$0xff]
    %v601 = vld [vmem:[%s3 + $0x30] sm:$0xff]
    %v602 = vld [vmem:[%s3 + $0x38] sm:$0xff]
    %v603 = vld [vmem:[%s3 + $0x40] sm:$0xff]
    %v604 = vld [vmem:[%s3 + $0x48] sm:$0xff]
    %v605 = vld [vmem:[%s3 + $0x50] sm:$0xff]
    %v606 = vld [vmem:[%s3 + $0x58] sm:$0xff]
    %v607 = vld [vmem:[%s3 + $0x60] sm:$0xff]
    %v608 = vld [vmem:[%s3 + $0x68] sm:$0xff]
    %v609 = vld [vmem:[%s3 + $0x70] sm:$0xff]
    %v610 = vld [vmem:[%s3 + $0x78] sm:$0xff]
    %611 = vmatprep.subr.mxu0 0.0
    %612 = vmatpush1.msra.mxu0 %v595
    %613 = vmatprep.subr.mxu0 0.0
    %614 = vmatpush1.msra.mxu0 %v596
    %615 = vmatprep.subr.mxu0 0.0
    %616 = vmatpush1.msra.mxu0 %v597
    %617 = vmatprep.subr.mxu0 0.0
    %618 = vmatpush1.msra.mxu0 %v598
    %619 = vmatprep.subr.mxu0 0.0
    %620 = vmatpush1.msra.mxu0 %v599
    %621 = vmatprep.subr.mxu0 0.0
    %622 = vmatpush1.msra.mxu0 %v600
    %623 = vmatprep.subr.mxu0 0.0
    %624 = vmatpush1.msra.mxu0 %v601
    %625 = vmatprep.subr.mxu0 0.0
    %626 = vmatpush1.msra.mxu0 %v602
    %627 = vmatprep.subr.mxu0 0.0
    %628 = vmatpush1.msra.mxu0 %v603
    %629 = vmatprep.subr.mxu0 0.0
    %630 = vmatpush1.msra.mxu0 %v604
    %631 = vmatprep.subr.mxu0 0.0
    %632 = vmatpush1.msra.mxu0 %v605
    %633 = vmatprep.subr.mxu0 0.0
    %634 = vmatpush1.msra.mxu0 %v606
    %635 = vmatprep.subr.mxu0 0.0
    %636 = vmatpush1.msra.mxu0 %v607
    %637 = vmatprep.subr.mxu0 0.0
    %638 = vmatpush1.msra.mxu0 %v608
    %639 = vmatprep.subr.mxu0 0.0
    %640 = vmatpush1.msra.mxu0 %v609
    %641 = vmatprep.subr.mxu0 0.0
    %642 = vmatpush1.msra.mxu0 %v610
    %643 = vmatprep.subr.mxu0 0.0
    %644 = vmatpush1.msra.mxu0 0.0
    %645 = vmatprep.subr.mxu0 0.0
    %646 = vmatpush1.msra.mxu0 0.0
    %647 = vmatprep.subr.mxu0 0.0
    %648 = vmatpush1.msra.mxu0 0.0
    %649 = vmatprep.subr.mxu0 0.0
    %650 = vmatpush1.msra.mxu0 0.0
    %651 = vmatprep.subr.mxu0 0.0
    %652 = vmatpush1.msra.mxu0 0.0
    %653 = vmatprep.subr.mxu0 0.0
    %654 = vmatpush1.msra.mxu0 0.0
    %655 = vmatprep.subr.mxu0 0.0
    %656 = vmatpush1.msra.mxu0 0.0
    %657 = vmatprep.subr.mxu0 0.0
    %658 = vmatpush1.msra.mxu0 0.0
    %659 = vmatprep.subr.mxu0 0.0
    %660 = vmatpush1.msra.mxu0 0.0
    %661 = vmatprep.subr.mxu0 0.0
    %662 = vmatpush1.msra.mxu0 0.0
    %663 = vmatprep.subr.mxu0 0.0
    %664 = vmatpush1.msra.mxu0 0.0
    %665 = vmatprep.subr.mxu0 0.0
    %666 = vmatpush1.msra.mxu0 0.0
    %667 = vmatprep.subr.mxu0 0.0
    %668 = vmatpush1.msra.mxu0 0.0
    %669 = vmatprep.subr.mxu0 0.0
    %670 = vmatpush1.msra.mxu0 0.0
    %671 = vmatprep.subr.mxu0 0.0
    %672 = vmatpush1.msra.mxu0 0.0
    %673 = vmatprep.subr.mxu0 0.0
    %674 = vmatpush1.msra.mxu0 0.0
    %675 = vmatprep.mubr.f32.mxu0 0.0
    %676 = vmatmul.mubr.f32.gmra.mrb[0].mxu0 %v594
    %v677 = vpop.f32.mrb[0].mxu0
    %v678 = vadd.f32 0.0, %v677
    %v679 = vpop.f32.mrb[0].mxu0
    %680 = vdwg.mxu0
    %v681 = vlaneseq
    %v682 = vand.u32 %v681, 127
    %vm683 = vcmp.lt.s32.totalorder %v682, 2
    %v684 = vsel %vm683, %v678, -1e+30
    %v685 = vsel %vm588, %v684, -inf
    %686 = vmax.xlane.f32.xlu0 %v685
    %v687 = vpop.xlane.xlu0 %686
    %v688 = vsub.f32 %v684, %v687
    %v689 = vmul.f32 %v688, 1.442695
    %v690 = vpow.pop %v689
    %v691 = vsel %vm588, %v690, 0.0
    %692 = vadd.xlane.f32.xlu0 %v691
    %v693 = vpop.xlane.xlu0 %692
    %v694 = vrcp.pop %v693
    %v695 = vmul.f32 %v690, %v694
    %696 = vst [vmem:[#allocation2] sm:$0x3] %v695
    %vm697 = vcmp.ge.f32.partialorder %v684, %v687
    %v698 = vcvt.s32.f32 %v682
    %v699 = vsel %vm697, %v698, 128.0
    %v700 = vsel %vm588, %v699, inf
    %701 = vmin.xlane.f32.xlu0 %v700
    %v702 = vpop.xlane.xlu0 %701
    %v703 = vcvt.f32.s32.to.zero.pseudo %v702
    %704 = vst [vmem:[%s5] sm:$0x3] %v703
    // Predicated region
    $region18: #{affect_recognition_forward.1} parent=1 // pred_check
      _
    $region19: #{affect_recognition_forward.1} parent=1 // pred_check_branch
      %706 = sbr.rel (0) target = $region21
    $region20: #{affect_recognition_forward.1} parent=1 // pred_region
      %s708 = ssub.s32 32, 32
      %709 = vsyncadd [#allocation3], %s708
      %s711 = sshll.u32 [#allocation2], 4
      %s712 = int_to_ptr.vmem [resolvable:$true] %s711
      %714 = dma.vmem_to_hbm [thread:$0]  %s712, 32, %s4, [#allocation3]
    $region21: #{affect_recognition_forward.1} parent=1 // pred_fallthru
      _
    // Predicated region
    $region22: #{affect_recognition_forward.1} parent=1 // pred_check
      _
    $region23: #{affect_recognition_forward.1} parent=1 // pred_check_branch
      %716 = sbr.rel (0) target = $region25
    $region24: #{affect_recognition_forward.1} parent=1 // pred_region
      _
    $region25: #{affect_recognition_forward.1} parent=1 // pred_fallthru
      _
    // Predicated region
    $region26: #{affect_recognition_forward.1} parent=1 // pred_check
      _
    $region27: #{affect_recognition_forward.1} parent=1 // pred_check_branch
      %718 = sbr.rel (0) target = $region29
    $region28: #{affect_recognition_forward.1} parent=1 // pred_region
      %719 = dma.done [#allocation3], 32
    $region29: #{affect_recognition_forward.1} parent=1 // pred_fallthru
      _
    // Predicated region
    $region30: #{affect_recognition_forward.1} parent=1 // pred_check
      _
    $region31: #{affect_recognition_forward.1} parent=1 // pred_check_branch
      %721 = sbr.rel (0) target = $region33
    $region32: #{affect_recognition_forward.1} parent=1 // pred_region
      _
    $region33: #{affect_recognition_forward.1} parent=1 // pred_fallthru
      _
    %722 = vsyncpa [#allocation3], 1

</llo_original>
